<compile_context>
chip_gen: v6e
topology: v6e:2x2x1
jax: 0.10.0
libtpu: 0.0.40
codegen_flags: <defaults>
</compile_context>

<pallas_src>
import functools

import jax
import jax.numpy as jnp
import numpy as np
from jax.experimental import pallas as pl
from jax.experimental.pallas import tpu as pltpu


def _round_up(x, m):
    return ((x + m - 1) // m) * m


def _mnet_kernel(x_ref, w12_ref, wexp_ref, wfs_ref, bias_ref, o_ref, *,
                 c2, o2w, ncol):
    # Fused CNN1+CNN2 (both 1x1; strides composed into the host-side stride-9
    # gather; no nonlinearity in between) as ONE small f32 MXU matmul.
    # x is channel-major (rows = input channels + a ones row carrying the fused
    # bias, zero-padded to 8 rows); result is the channel-major conv output.
    y = jnp.dot(w12_ref[...], x_ref[...],
                preferred_element_type=jnp.float32)                   # (8, ncol)

    # Separable MaxPool2d(3, 1) on the whole channel block: max over j-shifts
    # {0,1,2}, then i-shifts {0, o2w, 2*o2w}.  Wrap-around / padded lanes only
    # land in columns whose Wexp weights are zero, so they never affect valid
    # outputs.  4 XLU rolls + 4 VPU maxes total.
    r = jnp.maximum(y, jnp.maximum(pltpu.roll(y, ncol - 1, 1),
                                   pltpu.roll(y, ncol - 2, 1)))
    p = jnp.maximum(r, jnp.maximum(pltpu.roll(r, ncol - o2w, 1),
                                   pltpu.roll(r, ncol - 2 * o2w, 1)))

    # F1: C2 accumulating (1, ncol) x (ncol, F1) matmuls against the
    # validity-masked, permutation-folded weight (no lane concat / relayout).
    h1 = jnp.dot(p[0:1, :].astype(jnp.bfloat16), wexp_ref[0],
                 preferred_element_type=jnp.float32)
    for c in range(1, c2):
        h1 = h1 + jnp.dot(p[c:c + 1, :].astype(jnp.bfloat16), wexp_ref[c],
                          preferred_element_type=jnp.float32)
    h1 = jnp.maximum(h1 + bias_ref[0:1, :], 0.0)                      # (1, 128)

    # F2 -> ReLU -> F3, all lane-dense (padded to 128; padding exact).
    h2 = jnp.dot(h1.astype(jnp.bfloat16), wfs_ref[0],
                 preferred_element_type=jnp.float32)
    h2 = jnp.maximum(h2 + bias_ref[1:2, :], 0.0)                      # (1, 128)
    o = jnp.dot(h2.astype(jnp.bfloat16), wfs_ref[1],
                preferred_element_type=jnp.float32) + bias_ref[2:3, :]  # (1, mpad)

    # motion[0][0] = sigmoid, motion[0][1] = tanh, motion[0][2] = sigmoid
    # (the output has exactly one row, so row 0 == the whole output).
    cols = jax.lax.broadcasted_iota(jnp.int32, o.shape, 1)
    o_ref[...] = jnp.where((cols == 0) | (cols == 2), jax.nn.sigmoid(o),
                           jnp.where(cols == 1, jnp.tanh(o), o))


def make_mnet_forward(params, B, C, H, W):
    """One-time parameter prep; returns a jitted forward(state) -> (1, M)."""
    (W1, b1, W2, b2, Wf1, bf1, Wf2, bf2, Wf3, bf3) = params
    C2 = W2.shape[0]
    F1_DIM = Wf1.shape[0]
    F2_DIM = Wf2.shape[0]
    M = Wf3.shape[0]

    # Spatial sizes: conv(k=1, s=3) twice (== stride-9 gather), then MaxPool(3,1).
    o2h = (H - 1) // 9 + 1
    o2w = (W - 1) // 9 + 1
    ph, pw = o2h - 2, o2w - 2
    assert ph >= 1 and pw >= 1
    assert Wf1.shape[1] == B * C2 * ph * pw, "F1 in-features must match flatten size"

    nval = B * o2h * o2w
    # Lane-dense padding: must cover the largest pool-window offset (2*o2w + 2).
    ncol = _round_up(nval + 2 * o2w + 2, 128)
    mpad = _round_up(M, 128)
    f2p = _round_up(F2_DIM, 128)
    # Packed weight/bias buffers below assume one common 128-lane width.
    assert F1_DIM == 128 and f2p == 128 and mpad == 128

    rows_in = C + 1                       # +1 = ones row carrying the fused conv bias
    rows_in_pad = _round_up(rows_in, 8)
    rows_out_pad = _round_up(C2, 8)

    # ---- one-time weight plumbing (hoisted out of the per-call path) ----
    # NOTE: the W2@W1 fusion is valid only because the module applies no
    # nonlinearity between CNN1 and CNN2 (dropout = identity at inference).
    W12 = (W2 @ W1).astype(jnp.float32)                               # (C2, C)
    b12 = (W2 @ b1 + b2).astype(jnp.float32)                          # (C2,)
    W12a = jnp.concatenate([W12, b12[:, None]], axis=1)               # (C2, C+1)
    W12p = jnp.pad(W12a, ((0, rows_out_pad - C2),
                          (0, rows_in_pad - rows_in)))                # (8, 8)

    # Fold NCHW flatten permutation + pool-window validity mask into F1 weight.
    # torch flat index = b*(C2*ph*pw) + c*(ph*pw) + i*pw + j
    Wr = Wf1.T.reshape(B, C2, ph, pw, F1_DIM)                         # (b,c,i,j,f)
    Wr = jnp.transpose(Wr, (1, 0, 2, 3, 4))                           # (c,b,i,j,f)
    Wr = jnp.pad(Wr, ((0, 0), (0, 0), (0, o2h - ph), (0, o2w - pw), (0, 0)))
    Wexp = Wr.reshape(C2, nval, F1_DIM)
    Wexp = jnp.pad(Wexp, ((0, 0), (0, ncol - nval), (0, 0)))          # (C2,ncol,F1)
    Wexp = Wexp.astype(jnp.bfloat16)

    # Lane-dense F2/F3 (zero padding exact through ReLU); pack the two 128x128
    # weights and the three 128-wide biases into single buffers (fewer DMAs).
    Wf2T = jnp.pad(Wf2.T, ((0, 0), (0, f2p - F2_DIM)))                # (F1, 128)
    Wf3T = jnp.pad(Wf3.T, ((0, f2p - F2_DIM), (0, mpad - M)))         # (128, mpad)
    Wfs = jnp.stack([Wf2T, Wf3T]).astype(jnp.bfloat16)                # (2,128,128)
    bias = jnp.stack([
        bf1,
        jnp.pad(bf2, (0, f2p - F2_DIM)),
        jnp.pad(bf3, (0, mpad - M)),
    ]).astype(jnp.float32)                                            # (3, 128)

    prepped = (W12p, Wexp, Wfs, bias)
    prepped = jax.block_until_ready(jax.device_put(prepped))

    kernel = functools.partial(_mnet_kernel, c2=C2, o2w=o2w, ncol=ncol)
    vmem = pl.BlockSpec(memory_space=pltpu.MemorySpace.VMEM)

    pallas_fn = pl.pallas_call(
        kernel,
        out_shape=jax.ShapeDtypeStruct((1, mpad), jnp.float32),
        in_specs=[vmem] * 5,
        out_specs=vmem,
    )

    @jax.jit
    def forward(state):
        # stride-9 gather + channel-major lane packing (k = b*o2h*o2w + i*o2w + j)
        # plus a ones row (fused conv bias).  Padded lanes/rows are zero.
        # TODO(synk): this stays as one small fused XLA op before the pallas_call;
        # a lane-strided (stride-9) in-kernel gather has no clean Pallas form.
        xg = state[:, :, ::9, ::9]                                    # (B,C,o2h,o2w)
        x_cs = jnp.transpose(xg, (1, 0, 2, 3)).reshape(C, nval)       # (C, nval)
        x_aug = jnp.concatenate(
            [x_cs, jnp.ones((1, nval), jnp.float32)], axis=0)         # (C+1, nval)
        x_aug = jnp.pad(x_aug, ((0, rows_in_pad - rows_in),
                                (0, ncol - nval)))                    # (8, ncol)
        out = pallas_fn(x_aug, *prepped)                              # (1, mpad)
        return out[:, :M]

    return forward


def mnet_reference(state, params):
    """Plain-JAX reference mirroring the PyTorch forward (dropout = identity)."""
    (W1, b1, W2, b2, Wf1, bf1, Wf2, bf2, Wf3, bf3) = params
    y1 = jnp.einsum('oc,bchw->bohw', W1, state[:, :, ::3, ::3]) + b1[None, :, None, None]
    y2 = jnp.einsum('oc,bchw->bohw', W2, y1[:, :, ::3, ::3]) + b2[None, :, None, None]
    Hh, Ww = y2.shape[2], y2.shape[3]
    ph, pw = Hh - 2, Ww - 2
    p = y2[:, :, 0:ph, 0:pw]
    for di in range(3):
        for dj in range(3):
            p = jnp.maximum(p, y2[:, :, di:di + ph, dj:dj + pw])
    flat = p.reshape(1, -1)
    h1 = jax.nn.relu(flat @ Wf1.T + bf1)
    h2 = jax.nn.relu(h1 @ Wf2.T + bf2)
    o = h2 @ Wf3.T + bf3
    o = o.at[0, 0].set(jax.nn.sigmoid(o[0, 0]))
    o = o.at[0, 1].set(jnp.tanh(o[0, 1]))
    o = o.at[0, 2].set(jax.nn.sigmoid(o[0, 2]))
    return o


if __name__ == "__main__":
    # Shapes consistent with the module: the forward only works when the flattened
    # pooled tensor has 324 elements (nn.Linear(324, 128)).  With kernel=1/stride=3
    # convs and MaxPool(3,1): H=W=64, batch=3 gives 3 * 3 * 6 * 6 = 324.
    B, C, H, W = 3, 4, 64, 64
    MOTION_SHAPE = 4
    CNN_MID = 16
    F1_DIM, F2_DIM = 128, 64

    key = jax.random.PRNGKey(0)
    ks = jax.random.split(key, 11)

    def uni(k, shape, fan_in):
        bound = 1.0 / np.sqrt(fan_in)
        return jax.random.uniform(k, shape, jnp.float32, -bound, bound)

    W1 = uni(ks[0], (CNN_MID, C), C)
    b1 = uni(ks[1], (CNN_MID,), C)
    W2 = uni(ks[2], (3, CNN_MID), CNN_MID)
    b2 = uni(ks[3], (3,), CNN_MID)
    Wf1 = uni(ks[4], (F1_DIM, 324), 324)
    bf1 = uni(ks[5], (F1_DIM,), 324)
    Wf2 = uni(ks[6], (F2_DIM, F1_DIM), F1_DIM)
    bf2 = uni(ks[7], (F2_DIM,), F1_DIM)
    Wf3 = uni(ks[8], (MOTION_SHAPE, F2_DIM), F2_DIM)
    bf3 = uni(ks[9], (MOTION_SHAPE,), F2_DIM)
    state = jax.random.normal(ks[10], (B, C, H, W), jnp.float32)

    params = (W1, b1, W2, b2, Wf1, bf1, Wf2, bf2, Wf3, bf3)

    forward = make_mnet_forward(params, B, C, H, W)
    out = jax.block_until_ready(forward(state))

    ref = mnet_reference(state, params)
    # bf16 FC weights/activations are an accepted precision tradeoff (~1e-2 rel).
    np.testing.assert_allclose(np.asarray(out), np.asarray(ref), rtol=2e-2, atol=2e-2)

    print("KERNEL_OK")
</pallas_src>

<mosaic_0001>
module attributes {stable_mosaic.version = 11 : i64} {
  func.func @_mnet_kernel(%arg0: memref<8x256xf32, #tpu.memory_space<vmem>>, %arg1: memref<8x8xf32, #tpu.memory_space<vmem>>, %arg2: memref<3x256x128xbf16, #tpu.memory_space<vmem>>, %arg3: memref<2x128x128xbf16, #tpu.memory_space<vmem>>, %arg4: memref<3x128xf32, #tpu.memory_space<vmem>>, %arg5: memref<1x128xf32, #tpu.memory_space<vmem>>) attributes {dimension_semantics = [], scalar_prefetch = 0 : i64, scratch_operands = 0 : i64, tpu.core_type = #tpu.core_type<tc>} {
    %c0 = arith.constant 0 : index
    %c0_0 = arith.constant 0 : index
    %0 = vector.load %arg1[%c0, %c0_0] : memref<8x8xf32, #tpu.memory_space<vmem>>, vector<8x8xf32>
    %c0_1 = arith.constant 0 : index
    %c0_2 = arith.constant 0 : index
    %1 = vector.load %arg0[%c0_1, %c0_2] : memref<8x256xf32, #tpu.memory_space<vmem>>, vector<8x256xf32>
    %cst = arith.constant dense<0.000000e+00> : vector<8x256xf32>
    %2 = tpu.matmul %0, %1, %cst {dimension_numbers = #tpu.dot_dimension_numbers<[1], [0], [0], [1], [0, 0, 1, 1], [], []>} : vector<8x8xf32>, vector<8x256xf32>, vector<8x256xf32> -> vector<8x256xf32>
    %c255_i32 = arith.constant 255 : i32
    %3 = tpu.dynamic_rotate %2 by %c255_i32 dim 1 : vector<8x256xf32>, i32 -> vector<8x256xf32>
    %c254_i32 = arith.constant 254 : i32
    %4 = tpu.dynamic_rotate %2 by %c254_i32 dim 1 : vector<8x256xf32>, i32 -> vector<8x256xf32>
    %5 = arith.maximumf %3, %4 : vector<8x256xf32>
    %6 = arith.maximumf %2, %5 : vector<8x256xf32>
    %c248_i32 = arith.constant 248 : i32
    %7 = tpu.dynamic_rotate %6 by %c248_i32 dim 1 : vector<8x256xf32>, i32 -> vector<8x256xf32>
    %c240_i32 = arith.constant 240 : i32
    %8 = tpu.dynamic_rotate %6 by %c240_i32 dim 1 : vector<8x256xf32>, i32 -> vector<8x256xf32>
    %9 = arith.maximumf %7, %8 : vector<8x256xf32>
    %10 = arith.maximumf %6, %9 : vector<8x256xf32>
    %11 = vector.extract_strided_slice %10 {offsets = [0, 0], sizes = [1, 256], strides = [1, 1]} : vector<8x256xf32> to vector<1x256xf32>
    %12 = arith.truncf %11 : vector<1x256xf32> to vector<1x256xbf16>
    %c0_3 = arith.constant 0 : index
    %c0_4 = arith.constant 0 : index
    %c0_5 = arith.constant 0 : index
    %13 = vector.load %arg2[%c0_3, %c0_4, %c0_5] : memref<3x256x128xbf16, #tpu.memory_space<vmem>>, vector<1x256x128xbf16>
    %14 = vector.shape_cast %13 : vector<1x256x128xbf16> to vector<256x128xbf16>
    %cst_6 = arith.constant dense<0.000000e+00> : vector<1x128xf32>
    %15 = tpu.matmul %12, %14, %cst_6 {dimension_numbers = #tpu.dot_dimension_numbers<[1], [0], [0], [1], [0, 0, 1, 1], [], []>} : vector<1x256xbf16>, vector<256x128xbf16>, vector<1x128xf32> -> vector<1x128xf32>
    %16 = vector.extract_strided_slice %10 {offsets = [1, 0], sizes = [1, 256], strides = [1, 1]} : vector<8x256xf32> to vector<1x256xf32>
    %17 = arith.truncf %16 : vector<1x256xf32> to vector<1x256xbf16>
    %c1 = arith.constant 1 : index
    %c0_7 = arith.constant 0 : index
    %c0_8 = arith.constant 0 : index
    %18 = vector.load %arg2[%c1, %c0_7, %c0_8] : memref<3x256x128xbf16, #tpu.memory_space<vmem>>, vector<1x256x128xbf16>
    %19 = vector.shape_cast %18 : vector<1x256x128xbf16> to vector<256x128xbf16>
    %cst_9 = arith.constant dense<0.000000e+00> : vector<1x128xf32>
    %20 = tpu.matmul %17, %19, %cst_9 {dimension_numbers = #tpu.dot_dimension_numbers<[1], [0], [0], [1], [0, 0, 1, 1], [], []>} : vector<1x256xbf16>, vector<256x128xbf16>, vector<1x128xf32> -> vector<1x128xf32>
    %21 = arith.addf %15, %20 : vector<1x128xf32>
    %22 = vector.extract_strided_slice %10 {offsets = [2, 0], sizes = [1, 256], strides = [1, 1]} : vector<8x256xf32> to vector<1x256xf32>
    %23 = arith.truncf %22 : vector<1x256xf32> to vector<1x256xbf16>
    %c2 = arith.constant 2 : index
    %c0_10 = arith.constant 0 : index
    %c0_11 = arith.constant 0 : index
    %24 = vector.load %arg2[%c2, %c0_10, %c0_11] : memref<3x256x128xbf16, #tpu.memory_space<vmem>>, vector<1x256x128xbf16>
    %25 = vector.shape_cast %24 : vector<1x256x128xbf16> to vector<256x128xbf16>
    %cst_12 = arith.constant dense<0.000000e+00> : vector<1x128xf32>
    %26 = tpu.matmul %23, %25, %cst_12 {dimension_numbers = #tpu.dot_dimension_numbers<[1], [0], [0], [1], [0, 0, 1, 1], [], []>} : vector<1x256xbf16>, vector<256x128xbf16>, vector<1x128xf32> -> vector<1x128xf32>
    %27 = arith.addf %21, %26 : vector<1x128xf32>
    %c0_13 = arith.constant 0 : index
    %c0_14 = arith.constant 0 : index
    %28 = vector.load %arg4[%c0_13, %c0_14] : memref<3x128xf32, #tpu.memory_space<vmem>>, vector<1x128xf32>
    %29 = arith.addf %27, %28 : vector<1x128xf32>
    %cst_15 = arith.constant 0.000000e+00 : f32
    %30 = vector.broadcast %cst_15 : f32 to vector<1x128xf32>
    %31 = arith.maximumf %29, %30 : vector<1x128xf32>
    %32 = arith.truncf %31 : vector<1x128xf32> to vector<1x128xbf16>
    %c0_16 = arith.constant 0 : index
    %c0_17 = arith.constant 0 : index
    %c0_18 = arith.constant 0 : index
    %33 = vector.load %arg3[%c0_16, %c0_17, %c0_18] : memref<2x128x128xbf16, #tpu.memory_space<vmem>>, vector<1x128x128xbf16>
    %34 = vector.shape_cast %33 : vector<1x128x128xbf16> to vector<128x128xbf16>
    %cst_19 = arith.constant dense<0.000000e+00> : vector<1x128xf32>
    %35 = tpu.matmul %32, %34, %cst_19 {dimension_numbers = #tpu.dot_dimension_numbers<[1], [0], [0], [1], [0, 0, 1, 1], [], []>} : vector<1x128xbf16>, vector<128x128xbf16>, vector<1x128xf32> -> vector<1x128xf32>
    %c1_20 = arith.constant 1 : index
    %c0_21 = arith.constant 0 : index
    %36 = vector.load %arg4[%c1_20, %c0_21] : memref<3x128xf32, #tpu.memory_space<vmem>>, vector<1x128xf32>
    %37 = arith.addf %35, %36 : vector<1x128xf32>
    %cst_22 = arith.constant 0.000000e+00 : f32
    %38 = vector.broadcast %cst_22 : f32 to vector<1x128xf32>
    %39 = arith.maximumf %37, %38 : vector<1x128xf32>
    %40 = arith.truncf %39 : vector<1x128xf32> to vector<1x128xbf16>
    %c1_23 = arith.constant 1 : index
    %c0_24 = arith.constant 0 : index
    %c0_25 = arith.constant 0 : index
    %41 = vector.load %arg3[%c1_23, %c0_24, %c0_25] : memref<2x128x128xbf16, #tpu.memory_space<vmem>>, vector<1x128x128xbf16>
    %42 = vector.shape_cast %41 : vector<1x128x128xbf16> to vector<128x128xbf16>
    %cst_26 = arith.constant dense<0.000000e+00> : vector<1x128xf32>
    %43 = tpu.matmul %40, %42, %cst_26 {dimension_numbers = #tpu.dot_dimension_numbers<[1], [0], [0], [1], [0, 0, 1, 1], [], []>} : vector<1x128xbf16>, vector<128x128xbf16>, vector<1x128xf32> -> vector<1x128xf32>
    %c2_27 = arith.constant 2 : index
    %c0_28 = arith.constant 0 : index
    %44 = vector.load %arg4[%c2_27, %c0_28] : memref<3x128xf32, #tpu.memory_space<vmem>>, vector<1x128xf32>
    %45 = arith.addf %43, %44 : vector<1x128xf32>
    %46 = tpu.iota {dimensions = array<i32: 1>} : vector<1x128xi32>
    %c0_i32 = arith.constant 0 : i32
    %47 = vector.broadcast %c0_i32 : i32 to vector<1x128xi32>
    %48 = arith.cmpi eq, %46, %47 : vector<1x128xi32>
    %c2_i32 = arith.constant 2 : i32
    %49 = vector.broadcast %c2_i32 : i32 to vector<1x128xi32>
    %50 = arith.cmpi eq, %46, %49 : vector<1x128xi32>
    %51 = arith.ori %48, %50 : vector<1x128xi1>
    %52 = arith.negf %45 : vector<1x128xf32>
    %53 = math.exp %52 : vector<1x128xf32>
    %cst_29 = arith.constant 1.000000e+00 : f32
    %54 = vector.broadcast %cst_29 : f32 to vector<1x128xf32>
    %55 = arith.addf %54, %53 : vector<1x128xf32>
    %56 = arith.divf %54, %55 : vector<1x128xf32>
    %c1_i32 = arith.constant 1 : i32
    %57 = vector.broadcast %c1_i32 : i32 to vector<1x128xi32>
    %58 = arith.cmpi eq, %46, %57 : vector<1x128xi32>
    %59 = math.tanh %45 : vector<1x128xf32>
    %60 = arith.select %58, %59, %45 : vector<1x128xi1>, vector<1x128xf32>
    %61 = arith.select %51, %56, %60 : vector<1x128xi1>, vector<1x128xf32>
    %c0_30 = arith.constant 0 : index
    %c0_31 = arith.constant 0 : index
    %62 = vector.load %arg5[%c0_30, %c0_31] : memref<1x128xf32, #tpu.memory_space<vmem>>, vector<1x128xf32>
    tpu.vector_store %arg5[%c0_30, %c0_31], %61 {strides = array<i32>} : memref<1x128xf32, #tpu.memory_space<vmem>>, vector<1x128xf32>,
    return
  }
}

</mosaic_0001>

<llo_original>
// kernel: forward.1
$region0: #{forward.1}
  #allocation0 [shape = 'u32[]', space=smem, size = 0x4, offset = 0x4, fixed_abs, tag = 'smem constant byte address 0x4 - core index']
  #allocation1 [shape = 'u32[144,128]{1,0:T(1,128)}', space=vmem, size = 0x12000, scoped, tag = 'internal scratch']
  %s0 = inlined_call_operand.vmem [shape: f32[8,256], index: 0, kind: input, shape index: {}]
  %s1 = inlined_call_operand.hbm [shape: f32[8,8], index: 1, kind: input, shape index: {}]
  %s2 = inlined_call_operand.vmem [shape: bf16[3,256,128], index: 2, kind: input, shape index: {}]
  %s3 = inlined_call_operand.vmem [shape: bf16[2,128,128], index: 3, kind: input, shape index: {}]
  %s4 = inlined_call_operand.vmem [shape: f32[3,128], index: 4, kind: input, shape index: {}]
  %s5 = inlined_call_operand.hbm [shape: f32[1,128], index: 5, kind: output, shape index: {}]
  %s6 = sld [smem:[#allocation0]]
  $region34: #{forward.1} parent=0
    _
  %s8 = ssub.s32 1, %s6
  %s9 = scalar_select 0, %s8, %s6
  $region1: #{forward.1} parent=0
    #allocation2 [shape = 'u8[4096]{0}', space=vmem, size = 0x1000, scoped, tag = 'input window, operand 1, single buffered']
    #allocation3 [shape = 's32[1]{0}', space=sflag, size = 0x4, scoped, tag = 'scoped memory for forward.1']
    #allocation4 [shape = 's32[1]{0}', space=sflag, size = 0x4, scoped, tag = 'scoped memory for forward.1']
    #allocation5 [shape = 'u8[512]{0}', space=vmem, size = 0x400, scoped, tag = 'output window, operand 0, single buffered']
    %10 = vsyncpa [#allocation3], 0
    %11 = vsyncpa [#allocation4], 0
    // Predicated region
    $region2: #{forward.1} parent=1 // pred_check
      _
    $region3: #{forward.1} parent=1 // pred_check_branch
      %13 = sbr.rel (0) target = $region5
    $region4: #{forward.1} parent=1 // pred_region
      _
    $region5: #{forward.1} parent=1 // pred_fallthru
      _
    // Predicated region
    $region6: #{forward.1} parent=1 // pred_check
      _
    $region7: #{forward.1} parent=1 // pred_check_branch
      %15 = sbr.rel (0) target = $region9
    $region8: #{forward.1} parent=1 // pred_region
      %s17 = ssub.s32 128, 128
      %18 = vsyncadd [#allocation3], %s17
      %s20 = sshll.u32 [#allocation2], 4
      %s21 = int_to_ptr.vmem [resolvable:$true] %s20
      %23 = dma.hbm_to_vmem [thread:$0]  %s1, 128, %s21, [#allocation3]
    $region9: #{forward.1} parent=1 // pred_fallthru
      _
    // Predicated region
    $region10: #{forward.1} parent=1 // pred_check
      _
    $region11: #{forward.1} parent=1 // pred_check_branch
      %25 = sbr.rel (0) target = $region13
    $region12: #{forward.1} parent=1 // pred_region
      _
    $region13: #{forward.1} parent=1 // pred_fallthru
      _
    // Predicated region
    $region14: #{forward.1} parent=1 // pred_check
      _
    $region15: #{forward.1} parent=1 // pred_check_branch
      %27 = sbr.rel (0) target = $region17
    $region16: #{forward.1} parent=1 // pred_region
      _
    $region17: #{forward.1} parent=1 // pred_fallthru
      _
    // Predicated region
    $region18: #{forward.1} parent=1 // pred_check
      _
    $region19: #{forward.1} parent=1 // pred_check_branch
      %29 = sbr.rel (0) target = $region21
    $region20: #{forward.1} parent=1 // pred_region
      _
    $region21: #{forward.1} parent=1 // pred_fallthru
      _
    // Predicated region
    $region22: #{forward.1} parent=1 // pred_check
      _
    $region23: #{forward.1} parent=1 // pred_check_branch
      %31 = sbr.rel (0) target = $region25
    $region24: #{forward.1} parent=1 // pred_region
      %32 = dma.done [#allocation3], 128
    $region25: #{forward.1} parent=1 // pred_fallthru
      _
    %v34 = vld [vmem:[#allocation2] sm:$0xff]
    %v35 = vld [vmem:[%s0] sm:$0xff]
    %v36 = vld [vmem:[%s0 + $0x8] sm:$0xff]
    %vm37 = vcmask 64512
    %v39 = vsel %vm37, %v34, 0
    %41 = vmatprep.subr.mxu0 0.0
    %42 = vmatpush1.msra.mxu0 0.0
    %43 = vmatprep.subr.mxu0 0.0
    %44 = vmatpush1.msra.mxu0 0.0
    %45 = vmatprep.subr.mxu0 0.0
    %46 = vmatpush1.msra.mxu0 0.0
    %47 = vmatprep.subr.mxu0 0.0
    %48 = vmatpush1.msra.mxu0 0.0
    %49 = vmatprep.subr.mxu0 0.0
    %50 = vmatpush1.msra.mxu0 0.0
    %51 = vmatprep.subr.mxu0 0.0
    %52 = vmatpush1.msra.mxu0 0.0
    %53 = vmatprep.subr.mxu0 0.0
    %54 = vmatpush1.msra.mxu0 0.0
    %55 = vmatprep.subr.mxu0 0.0
    %56 = vmatpush1.msra.mxu0 0.0
    %57 = vmatprep.subr.mxu0 0.0
    %58 = vmatpush1.msra.mxu0 0.0
    %59 = vmatprep.subr.mxu0 0.0
    %60 = vmatpush1.msra.mxu0 0.0
    %61 = vmatprep.subr.mxu0 0.0
    %62 = vmatpush1.msra.mxu0 0.0
    %63 = vmatprep.subr.mxu0 0.0
    %64 = vmatpush1.msra.mxu0 0.0
    %65 = vmatprep.subr.mxu0 0.0
    %66 = vmatpush1.msra.mxu0 0.0
    %67 = vmatprep.subr.mxu0 0.0
    %68 = vmatpush1.msra.mxu0 0.0
    %69 = vmatprep.subr.mxu0 0.0
    %70 = vmatpush1.msra.mxu0 0.0
    %71 = vmatprep.subr.mxu0 %v36
    %72 = vmatpush1.msra.mxu0 %v35
    %73 = vmatprep.subr.mxu0 0.0
    %74 = vmatpush2.msra.mxu0 0.0
    %75 = vmatprep.subr.mxu0 0.0
    %76 = vmatpush2.msra.mxu0 0.0
    %77 = vmatprep.subr.mxu0 0.0
    %78 = vmatpush2.msra.mxu0 0.0
    %79 = vmatprep.subr.mxu0 0.0
    %80 = vmatpush2.msra.mxu0 0.0
    %81 = vmatprep.subr.mxu0 0.0
    %82 = vmatpush2.msra.mxu0 0.0
    %83 = vmatprep.subr.mxu0 0.0
    %84 = vmatpush2.msra.mxu0 0.0
    %85 = vmatprep.subr.mxu0 0.0
    %86 = vmatpush2.msra.mxu0 0.0
    %87 = vmatprep.subr.mxu0 0.0
    %88 = vmatpush2.msra.mxu0 0.0
    %89 = vmatprep.subr.mxu0 0.0
    %90 = vmatpush2.msra.mxu0 0.0
    %91 = vmatprep.subr.mxu0 0.0
    %92 = vmatpush2.msra.mxu0 0.0
    %93 = vmatprep.subr.mxu0 0.0
    %94 = vmatpush2.msra.mxu0 0.0
    %95 = vmatprep.subr.mxu0 0.0
    %96 = vmatpush2.msra.mxu0 0.0
    %97 = vmatprep.subr.mxu0 0.0
    %98 = vmatpush2.msra.mxu0 0.0
    %99 = vmatprep.subr.mxu0 0.0
    %100 = vmatpush2.msra.mxu0 0.0
    %101 = vmatprep.subr.mxu0 0.0
    %102 = vmatpush2.msra.mxu0 0.0
    %103 = vmatprep.subr.mxu0 0.0
    %104 = vmatpush2.msra.mxu0 0.0
    %105 = vmatprep.mubr.f32.mxu0 0.0
    %106 = vmatmul.mubr.f32.gmra.mxu0 %v39
    %v107 = vpop.f32.mrf.mxu0
    %v108 = vadd.f32 0.0, %v107
    %v109 = vpop.f32.mrf.mxu0
    %v110 = vadd.f32 0.0, %v109
    %111 = vdwg.mxu0
    %112 = vrot.lane.b32.xlu0 %v108, 127
    %v113 = vpop.permute.xlu0 %112
    %114 = vrot.lane.b32.xlu0 %v110, 127
    %v115 = vpop.permute.xlu0 %114
    %v116 = vlaneseq
    %v117 = vand.u32 %v116, 127
    %vm118 = vcmp.lt.s32.totalorder %v117, 127
    %v119 = vsel %vm118, %v113, %v115
    %v120 = vsel %vm118, %v115, %v113
    %121 = vrot.lane.b32.xlu0 %v108, 126
    %v122 = vpop.permute.xlu0 %121
    %123 = vrot.lane.b32.xlu0 %v110, 126
    %v124 = vpop.permute.xlu0 %123
    %vm125 = vcmp.lt.s32.totalorder %v117, 126
    %v126 = vsel %vm125, %v122, %v124
    %v127 = vsel %vm125, %v124, %v122
    %v128 = vmax.f32 %v119, %v126
    %v129 = vmax.f32 %v120, %v127
    %v130 = vmax.f32 %v108, %v128
    %v131 = vmax.f32 %v110, %v129
    %132 = vrot.lane.b32.xlu0 %v130, 120
    %v133 = vpop.permute.xlu0 %132
    %134 = vrot.lane.b32.xlu0 %v131, 120
    %v135 = vpop.permute.xlu0 %134
    %vm136 = vcmp.lt.s32.totalorder %v117, 120
    %v137 = vsel %vm136, %v133, %v135
    %v138 = vsel %vm136, %v135, %v133
    %139 = vrot.lane.b32.xlu0 %v130, 112
    %v140 = vpop.permute.xlu0 %139
    %141 = vrot.lane.b32.xlu0 %v131, 112
    %v142 = vpop.permute.xlu0 %141
    %vm143 = vcmp.lt.s32.totalorder %v117, 112
    %v144 = vsel %vm143, %v140, %v142
    %v145 = vsel %vm143, %v142, %v140
    %v146 = vmax.f32 %v137, %v144
    %v147 = vmax.f32 %v138, %v145
    %v148 = vmax.f32 %v130, %v146
    %v149 = vmax.f32 %v131, %v147
    %v150 = vpack.c.bf16 %v148, %v148
    %v151 = vpack.c.bf16 %v149, %v149
    %v152 = vld [vmem:[%s2] sm:$0xf]
    %v153 = vld [vmem:[%s2 + $0x4] sm:$0xf]
    %v154 = vld [vmem:[%s2 + $0x8] sm:$0xf]
    %v155 = vld [vmem:[%s2 + $0xc] sm:$0xf]
    %v156 = vld [vmem:[%s2 + $0x10] sm:$0xf]
    %v157 = vld [vmem:[%s2 + $0x14] sm:$0xf]
    %v158 = vld [vmem:[%s2 + $0x18] sm:$0xf]
    %v159 = vld [vmem:[%s2 + $0x1c] sm:$0xf]
    %v160 = vld [vmem:[%s2 + $0x20] sm:$0xf]
    %v161 = vld [vmem:[%s2 + $0x24] sm:$0xf]
    %v162 = vld [vmem:[%s2 + $0x28] sm:$0xf]
    %v163 = vld [vmem:[%s2 + $0x2c] sm:$0xf]
    %v164 = vld [vmem:[%s2 + $0x30] sm:$0xf]
    %v165 = vld [vmem:[%s2 + $0x34] sm:$0xf]
    %v166 = vld [vmem:[%s2 + $0x38] sm:$0xf]
    %v167 = vld [vmem:[%s2 + $0x3c] sm:$0xf]
    %v168 = vld [vmem:[%s2 + $0x40] sm:$0xf]
    %v169 = vld [vmem:[%s2 + $0x44] sm:$0xf]
    %v170 = vld [vmem:[%s2 + $0x48] sm:$0xf]
    %v171 = vld [vmem:[%s2 + $0x4c] sm:$0xf]
    %v172 = vld [vmem:[%s2 + $0x50] sm:$0xf]
    %v173 = vld [vmem:[%s2 + $0x54] sm:$0xf]
    %v174 = vld [vmem:[%s2 + $0x58] sm:$0xf]
    %v175 = vld [vmem:[%s2 + $0x5c] sm:$0xf]
    %v176 = vld [vmem:[%s2 + $0x60] sm:$0xf]
    %v177 = vld [vmem:[%s2 + $0x64] sm:$0xf]
    %v178 = vld [vmem:[%s2 + $0x68] sm:$0xf]
    %v179 = vld [vmem:[%s2 + $0x6c] sm:$0xf]
    %v180 = vld [vmem:[%s2 + $0x70] sm:$0xf]
    %v181 = vld [vmem:[%s2 + $0x74] sm:$0xf]
    %v182 = vld [vmem:[%s2 + $0x78] sm:$0xf]
    %v183 = vld [vmem:[%s2 + $0x7c] sm:$0xf]
    %s184 = scalar_lea.vmem %s2, 128
    %v185 = vld [vmem:[%s184] sm:$0xf]
    %v186 = vld [vmem:[%s184 + $0x4] sm:$0xf]
    %v187 = vld [vmem:[%s184 + $0x8] sm:$0xf]
    %v188 = vld [vmem:[%s184 + $0xc] sm:$0xf]
    %v189 = vld [vmem:[%s184 + $0x10] sm:$0xf]
    %v190 = vld [vmem:[%s184 + $0x14] sm:$0xf]
    %v191 = vld [vmem:[%s184 + $0x18] sm:$0xf]
    %v192 = vld [vmem:[%s184 + $0x1c] sm:$0xf]
    %v193 = vld [vmem:[%s184 + $0x20] sm:$0xf]
    %v194 = vld [vmem:[%s184 + $0x24] sm:$0xf]
    %v195 = vld [vmem:[%s184 + $0x28] sm:$0xf]
    %v196 = vld [vmem:[%s184 + $0x2c] sm:$0xf]
    %v197 = vld [vmem:[%s184 + $0x30] sm:$0xf]
    %v198 = vld [vmem:[%s184 + $0x34] sm:$0xf]
    %v199 = vld [vmem:[%s184 + $0x38] sm:$0xf]
    %v200 = vld [vmem:[%s184 + $0x3c] sm:$0xf]
    %v201 = vld [vmem:[%s184 + $0x40] sm:$0xf]
    %v202 = vld [vmem:[%s184 + $0x44] sm:$0xf]
    %v203 = vld [vmem:[%s184 + $0x48] sm:$0xf]
    %v204 = vld [vmem:[%s184 + $0x4c] sm:$0xf]
    %v205 = vld [vmem:[%s184 + $0x50] sm:$0xf]
    %v206 = vld [vmem:[%s184 + $0x54] sm:$0xf]
    %v207 = vld [vmem:[%s184 + $0x58] sm:$0xf]
    %v208 = vld [vmem:[%s184 + $0x5c] sm:$0xf]
    %v209 = vld [vmem:[%s184 + $0x60] sm:$0xf]
    %v210 = vld [vmem:[%s184 + $0x64] sm:$0xf]
    %v211 = vld [vmem:[%s184 + $0x68] sm:$0xf]
    %v212 = vld [vmem:[%s184 + $0x6c] sm:$0xf]
    %v213 = vld [vmem:[%s184 + $0x70] sm:$0xf]
    %v214 = vld [vmem:[%s184 + $0x74] sm:$0xf]
    %v215 = vld [vmem:[%s184 + $0x78] sm:$0xf]
    %v216 = vld [vmem:[%s184 + $0x7c] sm:$0xf]
    %v218 = vshrl.u32 %v150, 16
    %v221 = vshrl.u32 %v151, 16
    %v257 = vunpack.c.l.b16 %v185
    %v258 = vunpack.c.l.b16 %v186
    %v259 = vunpack.c.l.b16 %v187
    %v260 = vunpack.c.l.b16 %v188
    %v261 = vunpack.c.l.b16 %v189
    %v262 = vunpack.c.l.b16 %v190
    %v263 = vunpack.c.l.b16 %v191
    %v264 = vunpack.c.l.b16 %v192
    %v265 = vunpack.c.l.b16 %v193
    %v266 = vunpack.c.l.b16 %v194
    %v267 = vunpack.c.l.b16 %v195
    %v268 = vunpack.c.l.b16 %v196
    %v269 = vunpack.c.l.b16 %v197
    %v270 = vunpack.c.l.b16 %v198
    %v271 = vunpack.c.l.b16 %v199
    %v272 = vunpack.c.l.b16 %v200
    %v273 = vunpack.c.l.b16 %v201
    %v274 = vunpack.c.l.b16 %v202
    %v275 = vunpack.c.l.b16 %v203
    %v276 = vunpack.c.l.b16 %v204
    %v277 = vunpack.c.l.b16 %v205
    %v278 = vunpack.c.l.b16 %v206
    %v279 = vunpack.c.l.b16 %v207
    %v280 = vunpack.c.l.b16 %v208
    %v281 = vunpack.c.l.b16 %v209
    %v282 = vunpack.c.l.b16 %v210
    %v283 = vunpack.c.l.b16 %v211
    %v284 = vunpack.c.l.b16 %v212
    %v285 = vunpack.c.l.b16 %v213
    %v286 = vunpack.c.l.b16 %v214
    %v287 = vunpack.c.l.b16 %v215
    %v288 = vunpack.c.l.b16 %v216
    %v289 = vpack.c.b16 %v258, %v257
    %v290 = vpack.c.b16 %v260, %v259
    %v291 = vpack.c.b16 %v262, %v261
    %v292 = vpack.c.b16 %v264, %v263
    %v293 = vpack.c.b16 %v266, %v265
    %v294 = vpack.c.b16 %v268, %v267
    %v295 = vpack.c.b16 %v270, %v269
    %v296 = vpack.c.b16 %v272, %v271
    %v297 = vpack.c.b16 %v274, %v273
    %v298 = vpack.c.b16 %v276, %v275
    %v299 = vpack.c.b16 %v278, %v277
    %v300 = vpack.c.b16 %v280, %v279
    %v301 = vpack.c.b16 %v282, %v281
    %v302 = vpack.c.b16 %v284, %v283
    %v303 = vpack.c.b16 %v286, %v285
    %v304 = vpack.c.b16 %v288, %v287
    %321 = vmatprep.subr.bf16.mxu0 0
    %322 = vmatpush1.bf16.msra.mxu0 %v296
    %323 = vmatprep.subr.bf16.mxu0 0
    %324 = vmatpush1.bf16.msra.mxu0 %v295
    %325 = vmatprep.subr.bf16.mxu0 0
    %326 = vmatpush1.bf16.msra.mxu0 %v294
    %327 = vmatprep.subr.bf16.mxu0 0
    %328 = vmatpush1.bf16.msra.mxu0 %v293
    %329 = vmatprep.subr.bf16.mxu0 0
    %330 = vmatpush1.bf16.msra.mxu0 %v292
    %331 = vmatprep.subr.bf16.mxu0 0
    %332 = vmatpush1.bf16.msra.mxu0 %v291
    %333 = vmatprep.subr.bf16.mxu0 0
    %334 = vmatpush1.bf16.msra.mxu0 %v290
    %335 = vmatprep.subr.bf16.mxu0 0
    %336 = vmatpush1.bf16.msra.mxu0 %v289
    %337 = vmatprep.subr.bf16.mxu0 0
    %338 = vmatpush2.bf16.msra.mxu0 %v304
    %339 = vmatprep.subr.bf16.mxu0 0
    %340 = vmatpush2.bf16.msra.mxu0 %v303
    %341 = vmatprep.subr.bf16.mxu0 0
    %342 = vmatpush2.bf16.msra.mxu0 %v302
    %343 = vmatprep.subr.bf16.mxu0 0
    %344 = vmatpush2.bf16.msra.mxu0 %v301
    %345 = vmatprep.subr.bf16.mxu0 0
    %346 = vmatpush2.bf16.msra.mxu0 %v300
    %347 = vmatprep.subr.bf16.mxu0 0
    %348 = vmatpush2.bf16.msra.mxu0 %v299
    %349 = vmatprep.subr.bf16.mxu0 0
    %350 = vmatpush2.bf16.msra.mxu0 %v298
    %351 = vmatprep.subr.bf16.mxu0 0
    %352 = vmatpush2.bf16.msra.mxu0 %v297
    %353 = vmatprep.mubr.bf16.mxu0 %v221
    %354 = vmatmul.mubr.bf16.gmra.mxu0 %v218
    %v355 = vpop.f32.mrf.mxu0
    %v356 = vadd.f32 0.0, %v355
    %v357 = vpop.f32.mrf.mxu0
    %v358 = vpop.f32.mrf.mxu0
    %v359 = vpop.f32.mrf.mxu0
    %360 = vdwg.mxu0
    %v393 = vunpack.c.l.b16 %v152
    %v394 = vunpack.c.l.b16 %v153
    %v395 = vunpack.c.l.b16 %v154
    %v396 = vunpack.c.l.b16 %v155
    %v397 = vunpack.c.l.b16 %v156
    %v398 = vunpack.c.l.b16 %v157
    %v399 = vunpack.c.l.b16 %v158
    %v400 = vunpack.c.l.b16 %v159
    %v401 = vunpack.c.l.b16 %v160
    %v402 = vunpack.c.l.b16 %v161
    %v403 = vunpack.c.l.b16 %v162
    %v404 = vunpack.c.l.b16 %v163
    %v405 = vunpack.c.l.b16 %v164
    %v406 = vunpack.c.l.b16 %v165
    %v407 = vunpack.c.l.b16 %v166
    %v408 = vunpack.c.l.b16 %v167
    %v409 = vunpack.c.l.b16 %v168
    %v410 = vunpack.c.l.b16 %v169
    %v411 = vunpack.c.l.b16 %v170
    %v412 = vunpack.c.l.b16 %v171
    %v413 = vunpack.c.l.b16 %v172
    %v414 = vunpack.c.l.b16 %v173
    %v415 = vunpack.c.l.b16 %v174
    %v416 = vunpack.c.l.b16 %v175
    %v417 = vunpack.c.l.b16 %v176
    %v418 = vunpack.c.l.b16 %v177
    %v419 = vunpack.c.l.b16 %v178
    %v420 = vunpack.c.l.b16 %v179
    %v421 = vunpack.c.l.b16 %v180
    %v422 = vunpack.c.l.b16 %v181
    %v423 = vunpack.c.l.b16 %v182
    %v424 = vunpack.c.l.b16 %v183
    %v425 = vpack.c.b16 %v394, %v393
    %v426 = vpack.c.b16 %v396, %v395
    %v427 = vpack.c.b16 %v398, %v397
    %v428 = vpack.c.b16 %v400, %v399
    %v429 = vpack.c.b16 %v402, %v401
    %v430 = vpack.c.b16 %v404, %v403
    %v431 = vpack.c.b16 %v406, %v405
    %v432 = vpack.c.b16 %v408, %v407
    %v433 = vpack.c.b16 %v410, %v409
    %v434 = vpack.c.b16 %v412, %v411
    %v435 = vpack.c.b16 %v414, %v413
    %v436 = vpack.c.b16 %v416, %v415
    %v437 = vpack.c.b16 %v418, %v417
    %v438 = vpack.c.b16 %v420, %v419
    %v439 = vpack.c.b16 %v422, %v421
    %v440 = vpack.c.b16 %v424, %v423
    %457 = vmatprep.subr.bf16.mxu0 0
    %458 = vmatpush1.bf16.msra.mxu0 %v432
    %459 = vmatprep.subr.bf16.mxu0 0
    %460 = vmatpush1.bf16.msra.mxu0 %v431
    %461 = vmatprep.subr.bf16.mxu0 0
    %462 = vmatpush1.bf16.msra.mxu0 %v430
    %463 = vmatprep.subr.bf16.mxu0 0
    %464 = vmatpush1.bf16.msra.mxu0 %v429
    %465 = vmatprep.subr.bf16.mxu0 0
    %466 = vmatpush1.bf16.msra.mxu0 %v428
    %467 = vmatprep.subr.bf16.mxu0 0
    %468 = vmatpush1.bf16.msra.mxu0 %v427
    %469 = vmatprep.subr.bf16.mxu0 0
    %470 = vmatpush1.bf16.msra.mxu0 %v426
    %471 = vmatprep.subr.bf16.mxu0 0
    %472 = vmatpush1.bf16.msra.mxu0 %v425
    %473 = vmatprep.subr.bf16.mxu0 0
    %474 = vmatpush2.bf16.msra.mxu0 %v440
    %475 = vmatprep.subr.bf16.mxu0 0
    %476 = vmatpush2.bf16.msra.mxu0 %v439
    %477 = vmatprep.subr.bf16.mxu0 0
    %478 = vmatpush2.bf16.msra.mxu0 %v438
    %479 = vmatprep.subr.bf16.mxu0 0
    %480 = vmatpush2.bf16.msra.mxu0 %v437
    %481 = vmatprep.subr.bf16.mxu0 0
    %482 = vmatpush2.bf16.msra.mxu0 %v436
    %483 = vmatprep.subr.bf16.mxu0 0
    %484 = vmatpush2.bf16.msra.mxu0 %v435
    %485 = vmatprep.subr.bf16.mxu0 0
    %486 = vmatpush2.bf16.msra.mxu0 %v434
    %487 = vmatprep.subr.bf16.mxu0 0
    %488 = vmatpush2.bf16.msra.mxu0 %v433
    %489 = vmatprep.mubr.bf16.mxu0 %v151
    %490 = vmatmul.mubr.bf16.gmra.mxu0 %v150
    %v491 = vpop.f32.mrf.mxu0
    %v492 = vadd.f32 %v356, %v491
    %v493 = vpop.f32.mrf.mxu0
    %v494 = vpop.f32.mrf.mxu0
    %v495 = vpop.f32.mrf.mxu0
    %496 = vdwg.mxu0
    %s497 = scalar_lea.vmem %s2, 256
    %v498 = vld [vmem:[%s497] sm:$0xf]
    %v499 = vld [vmem:[%s497 + $0x4] sm:$0xf]
    %v500 = vld [vmem:[%s497 + $0x8] sm:$0xf]
    %v501 = vld [vmem:[%s497 + $0xc] sm:$0xf]
    %v502 = vld [vmem:[%s497 + $0x10] sm:$0xf]
    %v503 = vld [vmem:[%s497 + $0x14] sm:$0xf]
    %v504 = vld [vmem:[%s497 + $0x18] sm:$0xf]
    %v505 = vld [vmem:[%s497 + $0x1c] sm:$0xf]
    %v506 = vld [vmem:[%s497 + $0x20] sm:$0xf]
    %v507 = vld [vmem:[%s497 + $0x24] sm:$0xf]
    %v508 = vld [vmem:[%s497 + $0x28] sm:$0xf]
    %v509 = vld [vmem:[%s497 + $0x2c] sm:$0xf]
    %v510 = vld [vmem:[%s497 + $0x30] sm:$0xf]
    %v511 = vld [vmem:[%s497 + $0x34] sm:$0xf]
    %v512 = vld [vmem:[%s497 + $0x38] sm:$0xf]
    %v513 = vld [vmem:[%s497 + $0x3c] sm:$0xf]
    %v514 = vld [vmem:[%s497 + $0x40] sm:$0xf]
    %v515 = vld [vmem:[%s497 + $0x44] sm:$0xf]
    %v516 = vld [vmem:[%s497 + $0x48] sm:$0xf]
    %v517 = vld [vmem:[%s497 + $0x4c] sm:$0xf]
    %v518 = vld [vmem:[%s497 + $0x50] sm:$0xf]
    %v519 = vld [vmem:[%s497 + $0x54] sm:$0xf]
    %v520 = vld [vmem:[%s497 + $0x58] sm:$0xf]
    %v521 = vld [vmem:[%s497 + $0x5c] sm:$0xf]
    %v522 = vld [vmem:[%s497 + $0x60] sm:$0xf]
    %v523 = vld [vmem:[%s497 + $0x64] sm:$0xf]
    %v524 = vld [vmem:[%s497 + $0x68] sm:$0xf]
    %v525 = vld [vmem:[%s497 + $0x6c] sm:$0xf]
    %v526 = vld [vmem:[%s497 + $0x70] sm:$0xf]
    %v527 = vld [vmem:[%s497 + $0x74] sm:$0xf]
    %v528 = vld [vmem:[%s497 + $0x78] sm:$0xf]
    %v529 = vld [vmem:[%s497 + $0x7c] sm:$0xf]
    %v532 = vrot.slane %v150, 1
    %v533 = vrot.slane %v151, 1
    %v568 = vunpack.c.l.b16 %v498
    %v569 = vunpack.c.l.b16 %v499
    %v570 = vunpack.c.l.b16 %v500
    %v571 = vunpack.c.l.b16 %v501
    %v572 = vunpack.c.l.b16 %v502
    %v573 = vunpack.c.l.b16 %v503
    %v574 = vunpack.c.l.b16 %v504
    %v575 = vunpack.c.l.b16 %v505
    %v576 = vunpack.c.l.b16 %v506
    %v577 = vunpack.c.l.b16 %v507
    %v578 = vunpack.c.l.b16 %v508
    %v579 = vunpack.c.l.b16 %v509
    %v580 = vunpack.c.l.b16 %v510
    %v581 = vunpack.c.l.b16 %v511
    %v582 = vunpack.c.l.b16 %v512
    %v583 = vunpack.c.l.b16 %v513
    %v584 = vunpack.c.l.b16 %v514
    %v585 = vunpack.c.l.b16 %v515
    %v586 = vunpack.c.l.b16 %v516
    %v587 = vunpack.c.l.b16 %v517
    %v588 = vunpack.c.l.b16 %v518
    %v589 = vunpack.c.l.b16 %v519
    %v590 = vunpack.c.l.b16 %v520
    %v591 = vunpack.c.l.b16 %v521
    %v592 = vunpack.c.l.b16 %v522
    %v593 = vunpack.c.l.b16 %v523
    %v594 = vunpack.c.l.b16 %v524
    %v595 = vunpack.c.l.b16 %v525
    %v596 = vunpack.c.l.b16 %v526
    %v597 = vunpack.c.l.b16 %v527
    %v598 = vunpack.c.l.b16 %v528
    %v599 = vunpack.c.l.b16 %v529
    %v600 = vpack.c.b16 %v569, %v568
    %v601 = vpack.c.b16 %v571, %v570
    %v602 = vpack.c.b16 %v573, %v572
    %v603 = vpack.c.b16 %v575, %v574
    %v604 = vpack.c.b16 %v577, %v576
    %v605 = vpack.c.b16 %v579, %v578
    %v606 = vpack.c.b16 %v581, %v580
    %v607 = vpack.c.b16 %v583, %v582
    %v608 = vpack.c.b16 %v585, %v584
    %v609 = vpack.c.b16 %v587, %v586
    %v610 = vpack.c.b16 %v589, %v588
    %v611 = vpack.c.b16 %v591, %v590
    %v612 = vpack.c.b16 %v593, %v592
    %v613 = vpack.c.b16 %v595, %v594
    %v614 = vpack.c.b16 %v597, %v596
    %v615 = vpack.c.b16 %v599, %v598
    %632 = vmatprep.subr.bf16.mxu0 0
    %633 = vmatpush1.bf16.msra.mxu0 %v607
    %634 = vmatprep.subr.bf16.mxu0 0
    %635 = vmatpush1.bf16.msra.mxu0 %v606
    %636 = vmatprep.subr.bf16.mxu0 0
    %637 = vmatpush1.bf16.msra.mxu0 %v605
    %638 = vmatprep.subr.bf16.mxu0 0
    %639 = vmatpush1.bf16.msra.mxu0 %v604
    %640 = vmatprep.subr.bf16.mxu0 0
    %641 = vmatpush1.bf16.msra.mxu0 %v603
    %642 = vmatprep.subr.bf16.mxu0 0
    %643 = vmatpush1.bf16.msra.mxu0 %v602
    %644 = vmatprep.subr.bf16.mxu0 0
    %645 = vmatpush1.bf16.msra.mxu0 %v601
    %646 = vmatprep.subr.bf16.mxu0 0
    %647 = vmatpush1.bf16.msra.mxu0 %v600
    %648 = vmatprep.subr.bf16.mxu0 0
    %649 = vmatpush2.bf16.msra.mxu0 %v615
    %650 = vmatprep.subr.bf16.mxu0 0
    %651 = vmatpush2.bf16.msra.mxu0 %v614
    %652 = vmatprep.subr.bf16.mxu0 0
    %653 = vmatpush2.bf16.msra.mxu0 %v613
    %654 = vmatprep.subr.bf16.mxu0 0
    %655 = vmatpush2.bf16.msra.mxu0 %v612
    %656 = vmatprep.subr.bf16.mxu0 0
    %657 = vmatpush2.bf16.msra.mxu0 %v611
    %658 = vmatprep.subr.bf16.mxu0 0
    %659 = vmatpush2.bf16.msra.mxu0 %v610
    %660 = vmatprep.subr.bf16.mxu0 0
    %661 = vmatpush2.bf16.msra.mxu0 %v609
    %662 = vmatprep.subr.bf16.mxu0 0
    %663 = vmatpush2.bf16.msra.mxu0 %v608
    %664 = vmatprep.mubr.bf16.mxu0 %v533
    %665 = vmatmul.mubr.bf16.gmra.mxu0 %v532
    %v666 = vpop.f32.mrf.mxu0
    %v667 = vadd.f32 0.0, %v666
    %v668 = vpop.f32.mrf.mxu0
    %v669 = vpop.f32.mrf.mxu0
    %v670 = vpop.f32.mrf.mxu0
    %671 = vdwg.mxu0
    %v672 = vadd.f32 %v492, %v667
    %v673 = vld [vmem:[%s4] sm:$0x1]
    %v674 = vadd.f32 %v672, %v673
    %v675 = vmax.f32 %v674, 0.0
    %v676 = vpack.c.bf16 %v675, %v675
    %v677 = vld [vmem:[%s3] sm:$0xf]
    %v678 = vld [vmem:[%s3 + $0x4] sm:$0xf]
    %v679 = vld [vmem:[%s3 + $0x8] sm:$0xf]
    %v680 = vld [vmem:[%s3 + $0xc] sm:$0xf]
    %v681 = vld [vmem:[%s3 + $0x10] sm:$0xf]
    %v682 = vld [vmem:[%s3 + $0x14] sm:$0xf]
    %v683 = vld [vmem:[%s3 + $0x18] sm:$0xf]
    %v684 = vld [vmem:[%s3 + $0x1c] sm:$0xf]
    %v685 = vld [vmem:[%s3 + $0x20] sm:$0xf]
    %v686 = vld [vmem:[%s3 + $0x24] sm:$0xf]
    %v687 = vld [vmem:[%s3 + $0x28] sm:$0xf]
    %v688 = vld [vmem:[%s3 + $0x2c] sm:$0xf]
    %v689 = vld [vmem:[%s3 + $0x30] sm:$0xf]
    %v690 = vld [vmem:[%s3 + $0x34] sm:$0xf]
    %v691 = vld [vmem:[%s3 + $0x38] sm:$0xf]
    %v692 = vld [vmem:[%s3 + $0x3c] sm:$0xf]
    %v693 = vld [vmem:[%s4 + $0x1] sm:$0x1]
    %v710 = vunpack.c.l.b16 %v677
    %v711 = vunpack.c.l.b16 %v678
    %v712 = vunpack.c.l.b16 %v679
    %v713 = vunpack.c.l.b16 %v680
    %v714 = vunpack.c.l.b16 %v681
    %v715 = vunpack.c.l.b16 %v682
    %v716 = vunpack.c.l.b16 %v683
    %v717 = vunpack.c.l.b16 %v684
    %v718 = vunpack.c.l.b16 %v685
    %v719 = vunpack.c.l.b16 %v686
    %v720 = vunpack.c.l.b16 %v687
    %v721 = vunpack.c.l.b16 %v688
    %v722 = vunpack.c.l.b16 %v689
    %v723 = vunpack.c.l.b16 %v690
    %v724 = vunpack.c.l.b16 %v691
    %v725 = vunpack.c.l.b16 %v692
    %v726 = vpack.c.b16 %v711, %v710
    %v727 = vpack.c.b16 %v713, %v712
    %v728 = vpack.c.b16 %v715, %v714
    %v729 = vpack.c.b16 %v717, %v716
    %v730 = vpack.c.b16 %v719, %v718
    %v731 = vpack.c.b16 %v721, %v720
    %v732 = vpack.c.b16 %v723, %v722
    %v733 = vpack.c.b16 %v725, %v724
    %742 = vmatprep.subr.bf16.mxu0 0
    %743 = vmatpush1.bf16.msra.mxu0 %v733
    %744 = vmatprep.subr.bf16.mxu0 0
    %745 = vmatpush1.bf16.msra.mxu0 %v732
    %746 = vmatprep.subr.bf16.mxu0 0
    %747 = vmatpush1.bf16.msra.mxu0 %v731
    %748 = vmatprep.subr.bf16.mxu0 0
    %749 = vmatpush1.bf16.msra.mxu0 %v730
    %750 = vmatprep.subr.bf16.mxu0 0
    %751 = vmatpush1.bf16.msra.mxu0 %v729
    %752 = vmatprep.subr.bf16.mxu0 0
    %753 = vmatpush1.bf16.msra.mxu0 %v728
    %754 = vmatprep.subr.bf16.mxu0 0
    %755 = vmatpush1.bf16.msra.mxu0 %v727
    %756 = vmatprep.subr.bf16.mxu0 0
    %757 = vmatpush1.bf16.msra.mxu0 %v726
    %758 = vmatprep.subr.bf16.mxu0 0
    %759 = vmatpush2.bf16.msra.mxu0 0
    %760 = vmatprep.subr.bf16.mxu0 0
    %761 = vmatpush2.bf16.msra.mxu0 0
    %762 = vmatprep.subr.bf16.mxu0 0
    %763 = vmatpush2.bf16.msra.mxu0 0
    %764 = vmatprep.subr.bf16.mxu0 0
    %765 = vmatpush2.bf16.msra.mxu0 0
    %766 = vmatprep.subr.bf16.mxu0 0
    %767 = vmatpush2.bf16.msra.mxu0 0
    %768 = vmatprep.subr.bf16.mxu0 0
    %769 = vmatpush2.bf16.msra.mxu0 0
    %770 = vmatprep.subr.bf16.mxu0 0
    %771 = vmatpush2.bf16.msra.mxu0 0
    %772 = vmatprep.subr.bf16.mxu0 0
    %773 = vmatpush2.bf16.msra.mxu0 0
    %774 = vmatprep.mubr.bf16.mxu0 0
    %775 = vmatmul.mubr.bf16.gmra.mxu0 %v676
    %v776 = vpop.f32.mrf.mxu0
    %v777 = vadd.f32 %v693, %v776
    %v778 = vpop.f32.mrf.mxu0
    %v779 = vpop.f32.mrf.mxu0
    %v780 = vpop.f32.mrf.mxu0
    %781 = vdwg.mxu0
    %v782 = vmax.f32 %v777, 0.0
    %v783 = vpack.c.bf16 %v782, %v782
    %s784 = scalar_lea.vmem %s3, 64
    %v785 = vld [vmem:[%s784] sm:$0xf]
    %v786 = vld [vmem:[%s784 + $0x4] sm:$0xf]
    %v787 = vld [vmem:[%s784 + $0x8] sm:$0xf]
    %v788 = vld [vmem:[%s784 + $0xc] sm:$0xf]
    %v789 = vld [vmem:[%s784 + $0x10] sm:$0xf]
    %v790 = vld [vmem:[%s784 + $0x14] sm:$0xf]
    %v791 = vld [vmem:[%s784 + $0x18] sm:$0xf]
    %v792 = vld [vmem:[%s784 + $0x1c] sm:$0xf]
    %v793 = vld [vmem:[%s784 + $0x20] sm:$0xf]
    %v794 = vld [vmem:[%s784 + $0x24] sm:$0xf]
    %v795 = vld [vmem:[%s784 + $0x28] sm:$0xf]
    %v796 = vld [vmem:[%s784 + $0x2c] sm:$0xf]
    %v797 = vld [vmem:[%s784 + $0x30] sm:$0xf]
    %v798 = vld [vmem:[%s784 + $0x34] sm:$0xf]
    %v799 = vld [vmem:[%s784 + $0x38] sm:$0xf]
    %v800 = vld [vmem:[%s784 + $0x3c] sm:$0xf]
    %v801 = vld [vmem:[%s4 + $0x2] sm:$0x1]
    %v818 = vunpack.c.l.b16 %v785
    %v819 = vunpack.c.l.b16 %v786
    %v820 = vunpack.c.l.b16 %v787
    %v821 = vunpack.c.l.b16 %v788
    %v822 = vunpack.c.l.b16 %v789
    %v823 = vunpack.c.l.b16 %v790
    %v824 = vunpack.c.l.b16 %v791
    %v825 = vunpack.c.l.b16 %v792
    %v826 = vunpack.c.l.b16 %v793
    %v827 = vunpack.c.l.b16 %v794
    %v828 = vunpack.c.l.b16 %v795
    %v829 = vunpack.c.l.b16 %v796
    %v830 = vunpack.c.l.b16 %v797
    %v831 = vunpack.c.l.b16 %v798
    %v832 = vunpack.c.l.b16 %v799
    %v833 = vunpack.c.l.b16 %v800
    %v834 = vpack.c.b16 %v819, %v818
    %v835 = vpack.c.b16 %v821, %v820
    %v836 = vpack.c.b16 %v823, %v822
    %v837 = vpack.c.b16 %v825, %v824
    %v838 = vpack.c.b16 %v827, %v826
    %v839 = vpack.c.b16 %v829, %v828
    %v840 = vpack.c.b16 %v831, %v830
    %v841 = vpack.c.b16 %v833, %v832
    %850 = vmatprep.subr.bf16.mxu0 0
    %851 = vmatpush1.bf16.msra.mxu0 %v841
    %852 = vmatprep.subr.bf16.mxu0 0
    %853 = vmatpush1.bf16.msra.mxu0 %v840
    %854 = vmatprep.subr.bf16.mxu0 0
    %855 = vmatpush1.bf16.msra.mxu0 %v839
    %856 = vmatprep.subr.bf16.mxu0 0
    %857 = vmatpush1.bf16.msra.mxu0 %v838
    %858 = vmatprep.subr.bf16.mxu0 0
    %859 = vmatpush1.bf16.msra.mxu0 %v837
    %860 = vmatprep.subr.bf16.mxu0 0
    %861 = vmatpush1.bf16.msra.mxu0 %v836
    %862 = vmatprep.subr.bf16.mxu0 0
    %863 = vmatpush1.bf16.msra.mxu0 %v835
    %864 = vmatprep.subr.bf16.mxu0 0
    %865 = vmatpush1.bf16.msra.mxu0 %v834
    %866 = vmatprep.subr.bf16.mxu0 0
    %867 = vmatpush2.bf16.msra.mxu0 0
    %868 = vmatprep.subr.bf16.mxu0 0
    %869 = vmatpush2.bf16.msra.mxu0 0
    %870 = vmatprep.subr.bf16.mxu0 0
    %871 = vmatpush2.bf16.msra.mxu0 0
    %872 = vmatprep.subr.bf16.mxu0 0
    %873 = vmatpush2.bf16.msra.mxu0 0
    %874 = vmatprep.subr.bf16.mxu0 0
    %875 = vmatpush2.bf16.msra.mxu0 0
    %876 = vmatprep.subr.bf16.mxu0 0
    %877 = vmatpush2.bf16.msra.mxu0 0
    %878 = vmatprep.subr.bf16.mxu0 0
    %879 = vmatpush2.bf16.msra.mxu0 0
    %880 = vmatprep.subr.bf16.mxu0 0
    %881 = vmatpush2.bf16.msra.mxu0 0
    %882 = vmatprep.mubr.bf16.mxu0 0
    %883 = vmatmul.mubr.bf16.gmra.mxu0 %v783
    %v884 = vpop.f32.mrf.mxu0
    %v885 = vadd.f32 %v801, %v884
    %v886 = vpop.f32.mrf.mxu0
    %v887 = vpop.f32.mrf.mxu0
    %v888 = vpop.f32.mrf.mxu0
    %889 = vdwg.mxu0
    %vm890 = vcmp.eq.s32.totalorder %v117, 0
    %vm891 = vcmp.eq.s32.totalorder %v117, 2
    %vm892 = vmor %vm890, %vm891
    %v893 = vxor.u32 %v885, 2147483648
    %v894 = vmul.f32 %v893, 1.442695
    %v895 = vpow.pop %v894
    %v896 = vadd.f32 %v895, 1.0
    %v897 = vrcp.pop %v896
    %v898 = vmul.f32 1.0, %v897
    %vm899 = vcmp.eq.s32.totalorder %v117, 1
    %v900 = vtanh.pop %v885
    %v901 = vsel %vm899, %v900, %v885
    %v902 = vsel %vm892, %v898, %v901
    %903 = vst [vmem:[#allocation5] sm:$0x1] %v902
    // Predicated region
    $region26: #{forward.1} parent=1 // pred_check
      _
    $region27: #{forward.1} parent=1 // pred_check_branch
      %905 = sbr.rel (0) target = $region29
    $region28: #{forward.1} parent=1 // pred_region
      %s907 = ssub.s32 16, 16
      %908 = vsyncadd [#allocation4], %s907
      %s910 = sshll.u32 [#allocation5], 4
      %s911 = int_to_ptr.vmem [resolvable:$true] %s910
      %913 = dma.vmem_to_hbm [thread:$0]  %s911, 16, %s5, [#allocation4]
    $region29: #{forward.1} parent=1 // pred_fallthru
      _
    // Predicated region
    $region30: #{forward.1} parent=1 // pred_check
      _
    $region31: #{forward.1} parent=1 // pred_check_branch
      %915 = sbr.rel (0) target = $region33
    $region32: #{forward.1} parent=1 // pred_region
      %916 = dma.done [#allocation4], 16
    $region33: #{forward.1} parent=1 // pred_fallthru
      _
    %917 = vsyncpa [#allocation3], 1
    %918 = vsyncpa [#allocation4], 1

</llo_original>
